<compile_context>
chip_gen: v5e
topology: v5e:2x2
jax: 0.10.0
libtpu: 0.0.40
codegen_flags: <defaults>
</compile_context>

<pallas_src>
import jax
import jax.numpy as jnp
from jax.experimental import pallas as pl
from jax.experimental.pallas import tpu as pltpu


def normalizer_kernel(ids_ref, w_ref, states_ref, out_ref):
    # ids_ref:    (TB, 1)          int32 agent id per row
    # w_ref:      (A, D_pad)       pre-tiled scale table (resident, same block every step)
    # states_ref: (TB, D_pad)      lane-dense flat states tile
    # out_ref:    (TB, D_pad)
    ids = ids_ref[...]                                   # (TB, 1)
    w = w_ref[...]                                       # (A, D_pad)
    num_agents = w_ref.shape[0]

    # Per-row scale via A compare+select accumulations (pure VPU; A is small).
    scale = jnp.zeros(out_ref.shape, jnp.float32)
    for a in range(num_agents):                          # static loop (trace-time constant)
        scale = scale + jnp.where(ids == a, w[a:a + 1, :], 0.0)

    out_ref[...] = (states_ref[...] * scale).astype(out_ref.dtype)


def _pick_tile_b(B, D_pad, table_bytes):
    """Batch rows per grid step.

    * ~8 MiB of streamed payload (states in + out) per step so the fixed
      ~0.35us per-step overhead is well amortized even at v7x HBM bandwidth.
    * Double-buffered blocks plus the resident weight table kept under a
      24 MiB VMEM budget (safe on v7x's 64 MiB physical VMEM; conservative
      but costless on v5e/v6e's 128 MiB since we are already at ~8 MiB steps).
    * At least ~4 grid steps when the whole batch would fit one block, so the
      "parallel" axis gives v7x megacore something to shard.
    """
    per_row_stream = 2 * D_pad * 4                       # f32 states-in + out per row
    tb = max(8, (8 << 20) // per_row_stream)             # payload target

    per_row_vmem = per_row_stream + 4                    # + one int32 agent id per row
    budget = (24 << 20) - 2 * table_bytes
    tb = min(tb, max(8, budget // (2 * per_row_vmem)))   # x2 for double buffering

    quarter = -(-B // 4)                                 # ceil(B / 4): >= ~4 grid steps
    tb = min(tb, max(8, ((quarter + 7) // 8) * 8))

    tb = min(tb, ((B + 7) // 8) * 8)                     # never exceed (padded) batch
    return max(8, (tb // 8) * 8)                         # sublane-aligned


def normalizer_forward(states, agent_ids, weight, *, nstacks, base_state_size, num_agents):
    """states: (B, nstacks*base_state_size) float32
       agent_ids: (B,) int32
       weight: (base_state_size, num_agents) float32   (torch fc.weight layout)
       returns: (B, nstacks*base_state_size) float32"""
    S = base_state_size
    D = nstacks * S
    states_flat = states.reshape(-1, D).astype(jnp.float32)
    B = states_flat.shape[0]
    ids2d = agent_ids.reshape(-1, 1).astype(jnp.int32)            # (B, 1)

    # Pre-tile the tiny scale table once: w_full[a, k*S + s] = weight[s, a].
    w_full = jnp.tile(weight.T.astype(jnp.float32), (1, nstacks))  # (A, D)

    # Lane-dense guard: pad the flat feature axis to a multiple of 128 so the
    # output stores are full-lane `vst`, not masked partials.
    LANE = 128
    D_pad = ((D + LANE - 1) // LANE) * LANE
    if D_pad != D:
        states_flat = jnp.pad(states_flat, ((0, 0), (0, D_pad - D)))
        w_full = jnp.pad(w_full, ((0, 0), (0, D_pad - D)))

    table_bytes = num_agents * D_pad * 4
    TB = _pick_tile_b(B, D_pad, table_bytes)
    grid = (pl.cdiv(B, TB),)

    # VMEM limit derived from actual block bytes (+ slack), generation-safe.
    blocks_bytes = 2 * TB * (2 * D_pad + 1) * 4 + 2 * table_bytes
    vmem_limit = int(min(max(blocks_bytes + (4 << 20), 16 << 20), 40 << 20))

    out = pl.pallas_call(
        normalizer_kernel,
        out_shape=jax.ShapeDtypeStruct((B, D_pad), states_flat.dtype),
        grid=grid,
        in_specs=[
            pl.BlockSpec((TB, 1), lambda i: (i, 0)),                # agent ids
            pl.BlockSpec((num_agents, D_pad), lambda i: (0, 0)),    # scale table (resident)
            pl.BlockSpec((TB, D_pad), lambda i: (i, 0)),            # states (flat)
        ],
        out_specs=pl.BlockSpec((TB, D_pad), lambda i: (i, 0)),
        compiler_params=pltpu.CompilerParams(
            dimension_semantics=("parallel",),
            vmem_limit_bytes=vmem_limit,
        ),
    )(ids2d, w_full, states_flat)

    if D_pad != D:
        out = out[:, :D]
    return out.reshape(B, D)


if __name__ == "__main__":
    # Small, module-consistent shapes.
    base_state_size = 32
    nstacks = 4
    num_agents = 4
    B = 8  # batch (number of agent observations)

    key = jax.random.PRNGKey(0)
    k_w, k_s, k_a = jax.random.split(key, 3)

    # Deterministic init matching reset_parameters():
    # lim = 1/sqrt(fan_in) with fan_in = weight.size()[0] = base_state_size
    lim = 1.0 / jnp.sqrt(jnp.float32(base_state_size))
    weight = jax.random.uniform(
        k_w, (base_state_size, num_agents), dtype=jnp.float32, minval=-lim, maxval=lim
    )

    states = jax.random.normal(k_s, (B, nstacks * base_state_size), dtype=jnp.float32)
    agent_ids = jax.random.randint(k_a, (B,), 0, num_agents, dtype=jnp.int32)

    out = normalizer_forward(
        states, agent_ids, weight,
        nstacks=nstacks, base_state_size=base_state_size, num_agents=num_agents,
    )
    out = jax.block_until_ready(out)

    # Pure-JAX reference (same math as the torch forward).
    norm_ref = weight.T[agent_ids]                                     # (B, S)
    ref = (states.reshape(B, nstacks, base_state_size) * norm_ref[:, None, :]
           ).reshape(B, nstacks * base_state_size)
    assert out.shape == ref.shape
    assert jnp.allclose(out, ref, atol=1e-6, rtol=1e-6)

    # Non-lane-dense feature size exercises the padding path (D = 3*32 = 96).
    ns2 = 3
    states2 = jax.random.normal(
        jax.random.PRNGKey(1), (B, ns2 * base_state_size), dtype=jnp.float32
    )
    out2 = normalizer_forward(
        states2, agent_ids, weight,
        nstacks=ns2, base_state_size=base_state_size, num_agents=num_agents,
    )
    out2 = jax.block_until_ready(out2)
    ref2 = (states2.reshape(B, ns2, base_state_size) * norm_ref[:, None, :]
            ).reshape(B, ns2 * base_state_size)
    assert jnp.allclose(out2, ref2, atol=1e-6, rtol=1e-6)

    print("KERNEL_OK")
</pallas_src>

<mosaic_0001>
module attributes {stable_mosaic.version = 11 : i64} {
  func.func @normalizer_kernel(%arg0: i32, %arg1: memref<8x1xi32, #tpu.memory_space<vmem>>, %arg2: memref<4x128xf32, #tpu.memory_space<vmem>>, %arg3: memref<8x128xf32, #tpu.memory_space<vmem>>, %arg4: memref<8x128xf32, #tpu.memory_space<vmem>>) attributes {dimension_semantics = [#tpu.dimension_semantics<parallel>], iteration_bounds = array<i64: 1>, scalar_prefetch = 0 : i64, scratch_operands = 0 : i64, tpu.core_type = #tpu.core_type<tc>, window_params = [{transform_indices = @transform_0, window_bounds = array<i64: 8, 1>}, {pipeline_mode = #tpu.pipeline_mode<synchronous>, transform_indices = @transform_1, window_bounds = array<i64: 4, 128>}, {transform_indices = @transform_2, window_bounds = array<i64: 8, 128>}, {transform_indices = @transform_3, window_bounds = array<i64: 8, 128>}]} {
    %c0 = arith.constant 0 : index
    %c0_0 = arith.constant 0 : index
    %0 = vector.load %arg1[%c0, %c0_0] : memref<8x1xi32, #tpu.memory_space<vmem>>, vector<8x1xi32>
    %c0_1 = arith.constant 0 : index
    %c0_2 = arith.constant 0 : index
    %1 = vector.load %arg2[%c0_1, %c0_2] : memref<4x128xf32, #tpu.memory_space<vmem>>, vector<4x128xf32>
    %cst = arith.constant 0.000000e+00 : f32
    %2 = vector.broadcast %cst : f32 to vector<8x128xf32>
    %c0_i32 = arith.constant 0 : i32
    %3 = vector.broadcast %c0_i32 : i32 to vector<8x1xi32>
    %4 = arith.cmpi eq, %0, %3 : vector<8x1xi32>
    %5 = vector.extract_strided_slice %1 {offsets = [0, 0], sizes = [1, 128], strides = [1, 1]} : vector<4x128xf32> to vector<1x128xf32>
    %cst_3 = arith.constant 0.000000e+00 : f32
    %6 = vector.shape_cast %4 : vector<8x1xi1> to vector<8x1xi1>
    %7 = vector.broadcast %6 : vector<8x1xi1> to vector<8x128xi1>
    %8 = vector.shape_cast %5 : vector<1x128xf32> to vector<1x128xf32>
    %9 = vector.broadcast %8 : vector<1x128xf32> to vector<8x128xf32>
    %10 = vector.broadcast %cst_3 : f32 to vector<8x128xf32>
    %11 = arith.select %7, %9, %10 : vector<8x128xi1>, vector<8x128xf32>
    %12 = arith.addf %2, %11 : vector<8x128xf32>
    %c1_i32 = arith.constant 1 : i32
    %13 = vector.broadcast %c1_i32 : i32 to vector<8x1xi32>
    %14 = arith.cmpi eq, %0, %13 : vector<8x1xi32>
    %15 = vector.extract_strided_slice %1 {offsets = [1, 0], sizes = [1, 128], strides = [1, 1]} : vector<4x128xf32> to vector<1x128xf32>
    %cst_4 = arith.constant 0.000000e+00 : f32
    %16 = vector.shape_cast %14 : vector<8x1xi1> to vector<8x1xi1>
    %17 = vector.broadcast %16 : vector<8x1xi1> to vector<8x128xi1>
    %18 = vector.shape_cast %15 : vector<1x128xf32> to vector<1x128xf32>
    %19 = vector.broadcast %18 : vector<1x128xf32> to vector<8x128xf32>
    %20 = vector.broadcast %cst_4 : f32 to vector<8x128xf32>
    %21 = arith.select %17, %19, %20 : vector<8x128xi1>, vector<8x128xf32>
    %22 = arith.addf %12, %21 : vector<8x128xf32>
    %c2_i32 = arith.constant 2 : i32
    %23 = vector.broadcast %c2_i32 : i32 to vector<8x1xi32>
    %24 = arith.cmpi eq, %0, %23 : vector<8x1xi32>
    %25 = vector.extract_strided_slice %1 {offsets = [2, 0], sizes = [1, 128], strides = [1, 1]} : vector<4x128xf32> to vector<1x128xf32>
    %cst_5 = arith.constant 0.000000e+00 : f32
    %26 = vector.shape_cast %24 : vector<8x1xi1> to vector<8x1xi1>
    %27 = vector.broadcast %26 : vector<8x1xi1> to vector<8x128xi1>
    %28 = vector.shape_cast %25 : vector<1x128xf32> to vector<1x128xf32>
    %29 = vector.broadcast %28 : vector<1x128xf32> to vector<8x128xf32>
    %30 = vector.broadcast %cst_5 : f32 to vector<8x128xf32>
    %31 = arith.select %27, %29, %30 : vector<8x128xi1>, vector<8x128xf32>
    %32 = arith.addf %22, %31 : vector<8x128xf32>
    %c3_i32 = arith.constant 3 : i32
    %33 = vector.broadcast %c3_i32 : i32 to vector<8x1xi32>
    %34 = arith.cmpi eq, %0, %33 : vector<8x1xi32>
    %35 = vector.extract_strided_slice %1 {offsets = [3, 0], sizes = [1, 128], strides = [1, 1]} : vector<4x128xf32> to vector<1x128xf32>
    %cst_6 = arith.constant 0.000000e+00 : f32
    %36 = vector.shape_cast %34 : vector<8x1xi1> to vector<8x1xi1>
    %37 = vector.broadcast %36 : vector<8x1xi1> to vector<8x128xi1>
    %38 = vector.shape_cast %35 : vector<1x128xf32> to vector<1x128xf32>
    %39 = vector.broadcast %38 : vector<1x128xf32> to vector<8x128xf32>
    %40 = vector.broadcast %cst_6 : f32 to vector<8x128xf32>
    %41 = arith.select %37, %39, %40 : vector<8x128xi1>, vector<8x128xf32>
    %42 = arith.addf %32, %41 : vector<8x128xf32>
    %c0_7 = arith.constant 0 : index
    %c0_8 = arith.constant 0 : index
    %43 = vector.load %arg3[%c0_7, %c0_8] : memref<8x128xf32, #tpu.memory_space<vmem>>, vector<8x128xf32>
    %44 = arith.mulf %43, %42 : vector<8x128xf32>
    %c0_9 = arith.constant 0 : index
    %c0_10 = arith.constant 0 : index
    %45 = vector.load %arg4[%c0_9, %c0_10] : memref<8x128xf32, #tpu.memory_space<vmem>>, vector<8x128xf32>
    tpu.vector_store %arg4[%c0_9, %c0_10], %44 {strides = array<i32>} : memref<8x128xf32, #tpu.memory_space<vmem>>, vector<8x128xf32>,
    return
  }
  func.func @transform_0(%arg0: i32) -> (i32, i32) {
    %c0_i32 = arith.constant 0 : i32
    %c0_i32_0 = arith.constant 0 : i32
    return %arg0, %c0_i32 : i32, i32
  }
  func.func @transform_1(%arg0: i32) -> (i32, i32) {
    %c0_i32 = arith.constant 0 : i32
    %c0_i32_0 = arith.constant 0 : i32
    %c0_i32_1 = arith.constant 0 : i32
    return %c0_i32, %c0_i32_0 : i32, i32
  }
  func.func @transform_2(%arg0: i32) -> (i32, i32) {
    %c0_i32 = arith.constant 0 : i32
    %c0_i32_0 = arith.constant 0 : i32
    return %arg0, %c0_i32 : i32, i32
  }
  func.func @transform_3(%arg0: i32) -> (i32, i32) {
    %c0_i32 = arith.constant 0 : i32
    %c0_i32_0 = arith.constant 0 : i32
    return %arg0, %c0_i32 : i32, i32
  }
}

</mosaic_0001>

<llo_original>
// kernel: tpu_custom_call.1
$region0: #{tpu_custom_call.1}
  #allocation0 [shape = 'u32[]', space=smem, size = 0x4, offset = 0x4, fixed_abs, tag = 'smem constant byte address 0x4 - core index']
  #allocation1 [shape = 'u32[72,128]{1,0:T(1,128)}', space=vmem, size = 0x9000, scoped, tag = 'internal scratch']
  %s0 = inlined_call_operand.vmem [shape: s32[8,1], index: 0, kind: input, shape index: {}]
  %s1 = inlined_call_operand.hbm [shape: f32[4,128], index: 1, kind: input, shape index: {}]
  %s2 = inlined_call_operand.vmem [shape: f32[8,128], index: 2, kind: input, shape index: {}]
  %s3 = inlined_call_operand.hbm [shape: f32[8,128], index: 3, kind: output, shape index: {}]
  %s4 = sld [smem:[#allocation0]]
  $region26: #{tpu_custom_call.1} parent=0
    _
  %s6 = ssub.s32 1, %s4
  %s7 = scalar_select 0, %s6, %s4
  $region1: #{tpu_custom_call.1} parent=0
    #allocation2 [shape = 'u8[2048]{0}', space=vmem, size = 0x800, scoped, tag = 'input window, operand 1, single buffered']
    #allocation3 [shape = 's32[1]{0}', space=sflag, size = 0x4, scoped, tag = 'scoped memory for tpu_custom_call.1']
    #allocation4 [shape = 's32[1]{0}', space=sflag, size = 0x4, scoped, tag = 'scoped memory for tpu_custom_call.1']
    #allocation5 [shape = 'u8[4096]{0}', space=vmem, size = 0x1000, scoped, tag = 'output window, operand 0, single buffered']
    %8 = vsyncpa [#allocation3], 0
    %9 = vsyncpa [#allocation4], 0
    // Predicated region
    $region2: #{tpu_custom_call.1} parent=1 // pred_check
      _
    $region3: #{tpu_custom_call.1} parent=1 // pred_check_branch
      %11 = sbr.rel (0) target = $region5
    $region4: #{tpu_custom_call.1} parent=1 // pred_region
      _
    $region5: #{tpu_custom_call.1} parent=1 // pred_fallthru
      _
    // Predicated region
    $region6: #{tpu_custom_call.1} parent=1 // pred_check
      _
    $region7: #{tpu_custom_call.1} parent=1 // pred_check_branch
      %13 = sbr.rel (0) target = $region9
    $region8: #{tpu_custom_call.1} parent=1 // pred_region
      %15 = vsyncadd [#allocation3], 0
      %s17 = sshll.u32 %s1, 4
      %s18 = int_to_ptr.hbm [resolvable:$true] %s17
      %s19 = sshll.u32 [#allocation2], 4
      %s20 = int_to_ptr.vmem [resolvable:$true] %s19
      %22 = dma.hbm_to_vmem [thread:$0]  %s18, 64, %s20, [#allocation3]
    $region9: #{tpu_custom_call.1} parent=1 // pred_fallthru
      _
    // Predicated region
    $region10: #{tpu_custom_call.1} parent=1 // pred_check
      _
    $region11: #{tpu_custom_call.1} parent=1 // pred_check_branch
      %24 = sbr.rel (0) target = $region13
    $region12: #{tpu_custom_call.1} parent=1 // pred_region
      _
    $region13: #{tpu_custom_call.1} parent=1 // pred_fallthru
      _
    // Predicated region
    $region14: #{tpu_custom_call.1} parent=1 // pred_check
      _
    $region15: #{tpu_custom_call.1} parent=1 // pred_check_branch
      %26 = sbr.rel (0) target = $region17
    $region16: #{tpu_custom_call.1} parent=1 // pred_region
      %28 = dma.done [#allocation3], 64
    $region17: #{tpu_custom_call.1} parent=1 // pred_fallthru
      _
    %v29 = vld [vmem:[%s0] sm:$0xff]
    %v30 = vld [vmem:[#allocation2] sm:$0xf]
    %vm31 = vcmp.eq.s32.totalorder %v29, 0
    %v32 = vsel %vm31, 1, 0
    %33 = vset.pattern.permute.xlu0 0
    %34 = vperm.xlu0 %33, %v32
    %v35 = vpop.permute.xlu0 %34
    %vm36 = vcmp.eq.s32.totalorder %v35, 1
    %v37 = vperm.slane %v30, 0
    %v38 = vsel %vm36, %v37, 0.0
    %v39 = vadd.f32 %v38, 0.0
    %vm40 = vcmp.eq.s32.totalorder %v29, 1
    %v41 = vsel %vm40, 1, 0
    %42 = vset.pattern.permute.xlu0 0
    %43 = vperm.xlu0 %42, %v41
    %v44 = vpop.permute.xlu0 %43
    %vm45 = vcmp.eq.s32.totalorder %v44, 1
    %v46 = vperm.slane %v30, 1
    %v47 = vsel %vm45, %v46, 0.0
    %v48 = vadd.f32 %v39, %v47
    %vm49 = vcmp.eq.s32.totalorder %v29, 2
    %v50 = vsel %vm49, 1, 0
    %51 = vset.pattern.permute.xlu0 0
    %52 = vperm.xlu0 %51, %v50
    %v53 = vpop.permute.xlu0 %52
    %vm54 = vcmp.eq.s32.totalorder %v53, 1
    %v55 = vperm.slane %v30, 2
    %v56 = vsel %vm54, %v55, 0.0
    %v57 = vadd.f32 %v48, %v56
    %vm58 = vcmp.eq.s32.totalorder %v29, 3
    %v59 = vsel %vm58, 1, 0
    %60 = vset.pattern.permute.xlu0 0
    %61 = vperm.xlu0 %60, %v59
    %v62 = vpop.permute.xlu0 %61
    %vm63 = vcmp.eq.s32.totalorder %v62, 1
    %v64 = vperm.slane %v30, 3
    %v65 = vsel %vm63, %v64, 0.0
    %v66 = vadd.f32 %v57, %v65
    %v67 = vld [vmem:[%s2] sm:$0xff]
    %v68 = vmul.f32 %v67, %v66
    %69 = vst [vmem:[#allocation5] sm:$0xff] %v68
    // Predicated region
    $region18: #{tpu_custom_call.1} parent=1 // pred_check
      _
    $region19: #{tpu_custom_call.1} parent=1 // pred_check_branch
      %71 = sbr.rel (0) target = $region21
    $region20: #{tpu_custom_call.1} parent=1 // pred_region
      %73 = vsyncadd [#allocation4], 0
      %s75 = sshll.u32 [#allocation5], 4
      %s76 = int_to_ptr.vmem [resolvable:$true] %s75
      %s77 = sshll.u32 %s3, 4
      %s78 = int_to_ptr.hbm [resolvable:$true] %s77
      %80 = dma.vmem_to_hbm [thread:$0]  %s76, 128, %s78, [#allocation4]
    $region21: #{tpu_custom_call.1} parent=1 // pred_fallthru
      _
    // Predicated region
    $region22: #{tpu_custom_call.1} parent=1 // pred_check
      _
    $region23: #{tpu_custom_call.1} parent=1 // pred_check_branch
      %82 = sbr.rel (0) target = $region25
    $region24: #{tpu_custom_call.1} parent=1 // pred_region
      %84 = dma.done [#allocation4], 128
    $region25: #{tpu_custom_call.1} parent=1 // pred_fallthru
      _
    %85 = vsyncpa [#allocation3], 1
    %86 = vsyncpa [#allocation4], 1

</llo_original>
